<compile_context>
chip_gen: v7x
topology: tpu7x:2x2x1
jax: 0.10.0
libtpu: 0.0.40
codegen_flags: <defaults>
</compile_context>

<pallas_src>
import jax
import jax.numpy as jnp
from jax.experimental import pallas as pl
from jax.experimental.pallas import tpu as pltpu


def _round_up(n: int, m: int) -> int:
    return (n + m - 1) // m * m


def bottom_module_kernel(x_ref, w_ref, b_ref, o_ref):
    """Fused MLP stack: h = relu(h @ W_l + b_l), layer loop unrolled."""
    num_layers = w_ref.shape[0]
    h = x_ref[...]                                   # (TB, Dp_in) f32
    for l in range(num_layers):                      # static, small -> unroll
        # Weights are stored bf16 (pre-cast in wrapper); f32 MXU accumulation.
        y = jnp.dot(h.astype(jnp.bfloat16), w_ref[l],
                    preferred_element_type=jnp.float32)
        y = y + b_ref[l]                             # (TB, Dp_out) + (1, Dp_out), f32 VPU
        h = jnp.maximum(y, 0.0)                      # ReLU in f32 (v5e-safe)
    o_ref[...] = h.astype(o_ref.dtype)


def bottom_module_forward(x, weights, biases, *, batch_tile: int = 512,
                          lane_multiple: int = 128, out_dtype=None):
    """x: (B, D_in) f32; weights: (L, D_in, D_out); biases: (L, 1, D_out).

    Stacked-weights layout requires D_in == D_out for L > 1 (layers compose).
    """
    B, D_in = x.shape
    L, w_in, D_out = weights.shape
    assert w_in == D_in, "weights contraction dim must match x feature dim"
    if L > 1:
        assert D_in == D_out, (
            "stacked (L, D_in, D_out) weights require block_in_dim == "
            "block_out_dim when layer_num > 1")

    out_dtype = x.dtype if out_dtype is None else jnp.dtype(out_dtype)
    out_itemsize = jnp.dtype(out_dtype).itemsize

    # Lane-dense padding of feature dims (zeros => exact same math).
    Dp_in = _round_up(D_in, lane_multiple)
    Dp_out = _round_up(D_out, lane_multiple)

    # Batch tile: multiple of 8 sublanes, large so per-grid-step overhead is
    # amortised (kernel is HBM-bound at these widths); prefer >= 2 grid steps
    # so the "parallel" batch axis can shard across v7x's 2 TensorCores.
    Bp8 = _round_up(B, 8)
    TB = min(batch_tile, Bp8)
    if Bp8 // TB < 2 and Bp8 >= 16:
        TB = _round_up((Bp8 + 1) // 2, 8)
    Bp = _round_up(B, TB)

    needs_pad = (Dp_in != D_in) or (Dp_out != D_out) or (Bp != B)
    if needs_pad:
        # TODO(synk): the unaligned case still pays one extra HBM round trip
        #             for the activation pad / output slice; a fully fused path
        #             would keep x unpadded (block dim == full array dim) and
        #             pad only the output lanes.
        x_p = jnp.zeros((Bp, Dp_in), x.dtype).at[:B, :D_in].set(x)
        w_p = jnp.zeros((L, Dp_in, Dp_out), jnp.bfloat16).at[:, :D_in, :D_out].set(
            weights.astype(jnp.bfloat16))
        b_p = jnp.zeros((L, 1, Dp_out), jnp.float32).at[:, :, :D_out].set(
            biases.reshape(L, 1, D_out).astype(jnp.float32))
    else:
        # Zero-copy path: no activation pad / slice HBM round trips.
        x_p = x
        w_p = weights.astype(jnp.bfloat16)    # halves weight DMA + VMEM residency
        b_p = biases.reshape(L, 1, D_out).astype(jnp.float32)

    # Advisory cost estimate for XLA scheduling around the custom call.
    flops = 2 * Bp * L * Dp_in * Dp_out
    bytes_accessed = (Bp * Dp_in * x_p.dtype.itemsize
                      + L * Dp_in * Dp_out * 2          # bf16 weights
                      + L * Dp_out * 4                   # f32 biases
                      + Bp * Dp_out * out_itemsize)      # output writeback

    # VMEM budget: double-buffered activation tiles + resident bf16 weights
    # and f32 biases (sublane-padded). Capped at 64 MiB (v7x per-TC VMEM).
    vmem_need = (2 * TB * (Dp_in * 4 + Dp_out * out_itemsize)
                 + 2 * L * Dp_in * Dp_out * 2
                 + 2 * L * 8 * Dp_out * 4)
    vmem_limit = int(min(64 * 2 ** 20, max(32 * 2 ** 20, 4 * vmem_need)))

    out_p = pl.pallas_call(
        bottom_module_kernel,
        out_shape=jax.ShapeDtypeStruct((Bp, Dp_out), out_dtype),
        grid=(Bp // TB,),
        in_specs=[
            pl.BlockSpec((TB, Dp_in), lambda i: (i, 0)),            # batch-tiled
            pl.BlockSpec((L, Dp_in, Dp_out), lambda i: (0, 0, 0)),  # resident bf16
            pl.BlockSpec((L, 1, Dp_out), lambda i: (0, 0, 0)),      # resident f32
        ],
        out_specs=pl.BlockSpec((TB, Dp_out), lambda i: (i, 0)),
        compiler_params=pltpu.CompilerParams(
            dimension_semantics=("parallel",),
            vmem_limit_bytes=vmem_limit,
        ),
        cost_estimate=pl.CostEstimate(
            flops=flops, transcendentals=0, bytes_accessed=bytes_accessed),
    )(x_p, w_p, b_p)

    if needs_pad:
        return out_p[:B, :D_out]
    return out_p


def reference_forward(x, weights, biases):
    """Pure-JAX f32 reference for correctness checking."""
    h = x
    for l in range(weights.shape[0]):
        h = jnp.maximum(h @ weights[l] + biases[l], 0.0)
    return h


if __name__ == "__main__":
    # bottom_archs: layer_num=2, num_fields=4, embedding_dim=8,
    #               block_in_dim = block_out_dim = num_fields*embedding_dim = 32
    layer_num = 2
    num_fields = 4
    embedding_dim = 8
    block_in_dim = num_fields * embedding_dim   # 32
    block_out_dim = block_in_dim                # 32 (layers must compose)

    key = jax.random.PRNGKey(0)
    k_x, k_w, k_b, k_x2, k_w3, k_b3, k_x3 = jax.random.split(key, 7)

    weights = 0.1 * jax.random.normal(
        k_w, (layer_num, block_in_dim, block_out_dim), dtype=jnp.float32)
    biases = 0.01 * jax.random.normal(
        k_b, (layer_num, 1, block_out_dim), dtype=jnp.float32)

    # --- shipped small shape: batch=8 (single grid step, padded dims) ---
    batch = 8
    x_nfe = jax.random.normal(
        k_x, (batch, num_fields, embedding_dim), dtype=jnp.float32)
    x = x_nfe.reshape(batch, block_in_dim)

    out = jax.block_until_ready(bottom_module_forward(x, weights, biases))
    ref = reference_forward(x, weights, biases)
    assert out.shape == (batch, block_out_dim)
    # bf16 MXU inputs (f32 accumulation) => slightly looser tolerance vs f32 ref.
    assert jnp.allclose(out, ref, atol=2e-2, rtol=2e-2), "mismatch vs reference (B=8)"

    # --- larger batch: exercises the multi-step (megacore-friendly) grid ---
    batch2 = 256
    x2 = jax.random.normal(k_x2, (batch2, block_in_dim), dtype=jnp.float32)
    out2 = jax.block_until_ready(bottom_module_forward(x2, weights, biases))
    ref2 = reference_forward(x2, weights, biases)
    assert out2.shape == (batch2, block_out_dim)
    assert jnp.allclose(out2, ref2, atol=2e-2, rtol=2e-2), "mismatch vs reference (B=256)"

    # --- lane-aligned config: exercises the zero-copy (no pad/slice) path ---
    layer_num3, d3, batch3 = 3, 128, 512
    weights3 = 0.1 * jax.random.normal(k_w3, (layer_num3, d3, d3), dtype=jnp.float32)
    biases3 = 0.01 * jax.random.normal(k_b3, (layer_num3, 1, d3), dtype=jnp.float32)
    x3 = jax.random.normal(k_x3, (batch3, d3), dtype=jnp.float32)
    out3 = jax.block_until_ready(bottom_module_forward(x3, weights3, biases3))
    ref3 = reference_forward(x3, weights3, biases3)
    assert out3.shape == (batch3, d3)
    assert jnp.allclose(out3, ref3, atol=5e-2, rtol=5e-2), "mismatch vs reference (B=512,D=128)"

    print("KERNEL_OK")
</pallas_src>

<mosaic_0001>
module attributes {stable_mosaic.version = 11 : i64} {
  func.func @bottom_module_kernel(%arg0: i32, %arg1: memref<8x128xf32, #tpu.memory_space<vmem>>, %arg2: memref<2x128x128xbf16, #tpu.memory_space<vmem>>, %arg3: memref<2x1x128xf32, #tpu.memory_space<vmem>>, %arg4: memref<8x128xf32, #tpu.memory_space<vmem>>) attributes {dimension_semantics = [#tpu.dimension_semantics<parallel>], iteration_bounds = array<i64: 1>, scalar_prefetch = 0 : i64, scratch_operands = 0 : i64, tpu.core_type = #tpu.core_type<tc>, window_params = [{transform_indices = @transform_0, window_bounds = array<i64: 8, 128>}, {pipeline_mode = #tpu.pipeline_mode<synchronous>, transform_indices = @transform_1, window_bounds = array<i64: 2, 128, 128>}, {pipeline_mode = #tpu.pipeline_mode<synchronous>, transform_indices = @transform_2, window_bounds = array<i64: 2, 1, 128>}, {transform_indices = @transform_3, window_bounds = array<i64: 8, 128>}]} {
    %c0 = arith.constant 0 : index
    %c0_0 = arith.constant 0 : index
    %0 = vector.load %arg1[%c0, %c0_0] : memref<8x128xf32, #tpu.memory_space<vmem>>, vector<8x128xf32>
    %1 = arith.truncf %0 : vector<8x128xf32> to vector<8x128xbf16>
    %c0_1 = arith.constant 0 : index
    %c0_2 = arith.constant 0 : index
    %c0_3 = arith.constant 0 : index
    %2 = vector.load %arg2[%c0_1, %c0_2, %c0_3] : memref<2x128x128xbf16, #tpu.memory_space<vmem>>, vector<1x128x128xbf16>
    %3 = vector.shape_cast %2 : vector<1x128x128xbf16> to vector<128x128xbf16>
    %cst = arith.constant dense<0.000000e+00> : vector<8x128xf32>
    %4 = tpu.matmul %1, %3, %cst {dimension_numbers = #tpu.dot_dimension_numbers<[1], [0], [0], [1], [0, 0, 1, 1], [], []>} : vector<8x128xbf16>, vector<128x128xbf16>, vector<8x128xf32> -> vector<8x128xf32>
    %c0_4 = arith.constant 0 : index
    %c0_5 = arith.constant 0 : index
    %c0_6 = arith.constant 0 : index
    %5 = vector.load %arg3[%c0_4, %c0_5, %c0_6] : memref<2x1x128xf32, #tpu.memory_space<vmem>>, vector<1x1x128xf32>
    %6 = vector.shape_cast %5 : vector<1x1x128xf32> to vector<1x128xf32>
    %7 = vector.broadcast %6 : vector<1x128xf32> to vector<8x128xf32>
    %8 = arith.addf %4, %7 : vector<8x128xf32>
    %cst_7 = arith.constant 0.000000e+00 : f32
    %9 = vector.broadcast %cst_7 : f32 to vector<8x128xf32>
    %10 = arith.maximumf %8, %9 : vector<8x128xf32>
    %11 = arith.truncf %10 : vector<8x128xf32> to vector<8x128xbf16>
    %c1 = arith.constant 1 : index
    %c0_8 = arith.constant 0 : index
    %c0_9 = arith.constant 0 : index
    %12 = vector.load %arg2[%c1, %c0_8, %c0_9] : memref<2x128x128xbf16, #tpu.memory_space<vmem>>, vector<1x128x128xbf16>
    %13 = vector.shape_cast %12 : vector<1x128x128xbf16> to vector<128x128xbf16>
    %cst_10 = arith.constant dense<0.000000e+00> : vector<8x128xf32>
    %14 = tpu.matmul %11, %13, %cst_10 {dimension_numbers = #tpu.dot_dimension_numbers<[1], [0], [0], [1], [0, 0, 1, 1], [], []>} : vector<8x128xbf16>, vector<128x128xbf16>, vector<8x128xf32> -> vector<8x128xf32>
    %c1_11 = arith.constant 1 : index
    %c0_12 = arith.constant 0 : index
    %c0_13 = arith.constant 0 : index
    %15 = vector.load %arg3[%c1_11, %c0_12, %c0_13] : memref<2x1x128xf32, #tpu.memory_space<vmem>>, vector<1x1x128xf32>
    %16 = vector.shape_cast %15 : vector<1x1x128xf32> to vector<1x128xf32>
    %17 = vector.broadcast %16 : vector<1x128xf32> to vector<8x128xf32>
    %18 = arith.addf %14, %17 : vector<8x128xf32>
    %cst_14 = arith.constant 0.000000e+00 : f32
    %19 = vector.broadcast %cst_14 : f32 to vector<8x128xf32>
    %20 = arith.maximumf %18, %19 : vector<8x128xf32>
    %c0_15 = arith.constant 0 : index
    %c0_16 = arith.constant 0 : index
    %21 = vector.load %arg4[%c0_15, %c0_16] : memref<8x128xf32, #tpu.memory_space<vmem>>, vector<8x128xf32>
    tpu.vector_store %arg4[%c0_15, %c0_16], %20 {strides = array<i32>} : memref<8x128xf32, #tpu.memory_space<vmem>>, vector<8x128xf32>,
    return
  }
  func.func @transform_0(%arg0: i32) -> (i32, i32) {
    %c0_i32 = arith.constant 0 : i32
    %c0_i32_0 = arith.constant 0 : i32
    return %arg0, %c0_i32 : i32, i32
  }
  func.func @transform_1(%arg0: i32) -> (i32, i32, i32) {
    %c0_i32 = arith.constant 0 : i32
    %c0_i32_0 = arith.constant 0 : i32
    %c0_i32_1 = arith.constant 0 : i32
    %c0_i32_2 = arith.constant 0 : i32
    return %c0_i32, %c0_i32_0, %c0_i32_1 : i32, i32, i32
  }
  func.func @transform_2(%arg0: i32) -> (i32, i32, i32) {
    %c0_i32 = arith.constant 0 : i32
    %c0_i32_0 = arith.constant 0 : i32
    %c0_i32_1 = arith.constant 0 : i32
    %c0_i32_2 = arith.constant 0 : i32
    return %c0_i32, %c0_i32_0, %c0_i32_1 : i32, i32, i32
  }
  func.func @transform_3(%arg0: i32) -> (i32, i32) {
    %c0_i32 = arith.constant 0 : i32
    %c0_i32_0 = arith.constant 0 : i32
    return %arg0, %c0_i32 : i32, i32
  }
}

</mosaic_0001>

<llo_original>
// kernel: tpu_custom_call.1
$region0: #{tpu_custom_call.1}
  #allocation0 [shape = 'u32[]', space=smem, size = 0x4, offset = 0x4, fixed_abs, tag = 'smem constant byte address 0x4 - core index']
  #allocation1 [shape = 'u32[144,128]{1,0:T(1,128)}', space=vmem, size = 0x12000, scoped, tag = 'internal scratch']
  %s0 = inlined_call_operand.hbm [shape: f32[8,128], index: 0, kind: input, shape index: {}]
  %s1 = inlined_call_operand.hbm [shape: bf16[2,128,128], index: 1, kind: input, shape index: {}]
  %s2 = inlined_call_operand.vmem [shape: f32[2,1,128], index: 2, kind: input, shape index: {}]
  %s3 = inlined_call_operand.hbm [shape: f32[8,128], index: 3, kind: output, shape index: {}]
  %s4 = sld [smem:[#allocation0]]
  $region30: #{tpu_custom_call.1} parent=0
    _
  %s6 = ssub.s32 1, %s4
  %s7 = scalar_select 0, %s6, %s4
  $region1: #{tpu_custom_call.1} parent=0
    #allocation2 [shape = 'u8[4096]{0}', space=vmem, size = 0x1000, scoped, tag = 'input window, operand 0, single buffered']
    #allocation3 [shape = 's32[1]{0}', space=sflag, size = 0x4, scoped, tag = 'scoped memory for tpu_custom_call.1']
    #allocation4 [shape = 's32[1]{0}', space=sflag, size = 0x4, scoped, tag = 'scoped memory for tpu_custom_call.1']
    #allocation5 [shape = 'u8[65536]{0}', space=vmem, size = 0x10000, scoped, tag = 'input window, operand 1, single buffered']
    #allocation6 [shape = 's32[1]{0}', space=sflag, size = 0x4, scoped, tag = 'scoped memory for tpu_custom_call.1']
    #allocation7 [shape = 'u8[4096]{0}', space=vmem, size = 0x1000, scoped, tag = 'output window, operand 0, single buffered']
    %8 = vsyncpa [#allocation3], 0
    %9 = vsyncpa [#allocation6], 0
    %10 = vsyncpa [#allocation4], 0
    // Predicated region
    $region2: #{tpu_custom_call.1} parent=1 // pred_check
      _
    $region3: #{tpu_custom_call.1} parent=1 // pred_check_branch
      %12 = sbr.rel (0) target = $region5
    $region4: #{tpu_custom_call.1} parent=1 // pred_region
      %s14 = ssub.s32 128, 128
      %15 = vsyncadd [#allocation3], %s14
      %s17 = sshll.u32 [#allocation2], 4
      %s18 = int_to_ptr.vmem [resolvable:$true] %s17
      %20 = dma.hbm_to_vmem [thread:$0]  %s0, 128, %s18, [#allocation3]
    $region5: #{tpu_custom_call.1} parent=1 // pred_fallthru
      _
    // Predicated region
    $region6: #{tpu_custom_call.1} parent=1 // pred_check
      _
    $region7: #{tpu_custom_call.1} parent=1 // pred_check_branch
      %22 = sbr.rel (0) target = $region9
    $region8: #{tpu_custom_call.1} parent=1 // pred_region
      %s24 = ssub.s32 2048, 2048
      %25 = vsyncadd [#allocation6], %s24
      %s26 = sshll.u32 [#allocation5], 4
      %s27 = int_to_ptr.vmem [resolvable:$true] %s26
      %32 = dma.hbm_to_vmem [thread:$0]  %s1, 2048, %s27, [#allocation6], 64, 64, 4
    $region9: #{tpu_custom_call.1} parent=1 // pred_fallthru
      _
    // Predicated region
    $region10: #{tpu_custom_call.1} parent=1 // pred_check
      _
    $region11: #{tpu_custom_call.1} parent=1 // pred_check_branch
      %34 = sbr.rel (0) target = $region13
    $region12: #{tpu_custom_call.1} parent=1 // pred_region
      _
    $region13: #{tpu_custom_call.1} parent=1 // pred_fallthru
      _
    // Predicated region
    $region14: #{tpu_custom_call.1} parent=1 // pred_check
      _
    $region15: #{tpu_custom_call.1} parent=1 // pred_check_branch
      %36 = sbr.rel (0) target = $region17
    $region16: #{tpu_custom_call.1} parent=1 // pred_region
      %37 = dma.done [#allocation3], 128
    $region17: #{tpu_custom_call.1} parent=1 // pred_fallthru
      _
    // Predicated region
    $region18: #{tpu_custom_call.1} parent=1 // pred_check
      _
    $region19: #{tpu_custom_call.1} parent=1 // pred_check_branch
      %39 = sbr.rel (0) target = $region21
    $region20: #{tpu_custom_call.1} parent=1 // pred_region
      %40 = dma.done [#allocation6], 2048
    $region21: #{tpu_custom_call.1} parent=1 // pred_fallthru
      _
    %v42 = vld [vmem:[#allocation2] sm:$0xff]
    %v43 = vpack.c.bf16 %v42, %v42
    %v44 = vld [vmem:[#allocation5] sm:$0xf]
    %v45 = vld [vmem:[#allocation5 + $0x4] sm:$0xf]
    %v46 = vld [vmem:[#allocation5 + $0x8] sm:$0xf]
    %v47 = vld [vmem:[#allocation5 + $0xc] sm:$0xf]
    %v48 = vld [vmem:[#allocation5 + $0x10] sm:$0xf]
    %v49 = vld [vmem:[#allocation5 + $0x14] sm:$0xf]
    %v50 = vld [vmem:[#allocation5 + $0x18] sm:$0xf]
    %v51 = vld [vmem:[#allocation5 + $0x1c] sm:$0xf]
    %v52 = vld [vmem:[#allocation5 + $0x20] sm:$0xf]
    %v53 = vld [vmem:[#allocation5 + $0x24] sm:$0xf]
    %v54 = vld [vmem:[#allocation5 + $0x28] sm:$0xf]
    %v55 = vld [vmem:[#allocation5 + $0x2c] sm:$0xf]
    %v56 = vld [vmem:[#allocation5 + $0x30] sm:$0xf]
    %v57 = vld [vmem:[#allocation5 + $0x34] sm:$0xf]
    %v58 = vld [vmem:[#allocation5 + $0x38] sm:$0xf]
    %v59 = vld [vmem:[#allocation5 + $0x3c] sm:$0xf]
    %v60 = vld [vmem:[%s2] sm:$0x1]
    %v62 = vlaneseq
    %v63 = vshrl.u32 %v62, 7
    %v64 = vsub.s32 0, %v63
    %v65 = vrot.slane %v60, %v64
    %v83 = vunpack.c.l.b16 %v44
    %v84 = vunpack.c.l.b16 %v45
    %v85 = vunpack.c.l.b16 %v46
    %v86 = vunpack.c.l.b16 %v47
    %v87 = vunpack.c.l.b16 %v48
    %v88 = vunpack.c.l.b16 %v49
    %v89 = vunpack.c.l.b16 %v50
    %v90 = vunpack.c.l.b16 %v51
    %v91 = vunpack.c.l.b16 %v52
    %v92 = vunpack.c.l.b16 %v53
    %v93 = vunpack.c.l.b16 %v54
    %v94 = vunpack.c.l.b16 %v55
    %v95 = vunpack.c.l.b16 %v56
    %v96 = vunpack.c.l.b16 %v57
    %v97 = vunpack.c.l.b16 %v58
    %v98 = vunpack.c.l.b16 %v59
    %v99 = vpack.c.b16 %v84, %v83
    %v100 = vpack.c.b16 %v86, %v85
    %v101 = vpack.c.b16 %v88, %v87
    %v102 = vpack.c.b16 %v90, %v89
    %v103 = vpack.c.b16 %v92, %v91
    %v104 = vpack.c.b16 %v94, %v93
    %v105 = vpack.c.b16 %v96, %v95
    %v106 = vpack.c.b16 %v98, %v97
    %115 = vmatprep.subr.bf16.mxu0 0
    %116 = vmatpush1.bf16.msra.mxu0 %v99
    %117 = vmatprep.subr.bf16.mxu0 0
    %118 = vmatpush1.bf16.msra.mxu0 %v100
    %119 = vmatprep.subr.bf16.mxu0 0
    %120 = vmatpush1.bf16.msra.mxu0 %v101
    %121 = vmatprep.subr.bf16.mxu0 0
    %122 = vmatpush1.bf16.msra.mxu0 %v102
    %123 = vmatprep.subr.bf16.mxu0 0
    %124 = vmatpush1.bf16.msra.mxu0 %v103
    %125 = vmatprep.subr.bf16.mxu0 0
    %126 = vmatpush1.bf16.msra.mxu0 %v104
    %127 = vmatprep.subr.bf16.mxu0 0
    %128 = vmatpush1.bf16.msra.mxu0 %v105
    %129 = vmatprep.subr.bf16.mxu0 0
    %130 = vmatpush1.bf16.msra.mxu0 %v106
    %131 = vmatprep.subr.bf16.mxu0 0
    %132 = vmatpush1.bf16.msra.mxu0 0
    %133 = vmatprep.subr.bf16.mxu0 0
    %134 = vmatpush1.bf16.msra.mxu0 0
    %135 = vmatprep.subr.bf16.mxu0 0
    %136 = vmatpush1.bf16.msra.mxu0 0
    %137 = vmatprep.subr.bf16.mxu0 0
    %138 = vmatpush1.bf16.msra.mxu0 0
    %139 = vmatprep.subr.bf16.mxu0 0
    %140 = vmatpush1.bf16.msra.mxu0 0
    %141 = vmatprep.subr.bf16.mxu0 0
    %142 = vmatpush1.bf16.msra.mxu0 0
    %143 = vmatprep.subr.bf16.mxu0 0
    %144 = vmatpush1.bf16.msra.mxu0 0
    %145 = vmatprep.subr.bf16.mxu0 0
    %146 = vmatpush1.bf16.msra.mxu0 0
    %147 = vmatprep.mubr.bf16.mxu0 0
    %148 = vmatmul.mubr.bf16.gmra.mrb[0].mxu0 %v43
    %v149 = vpop.f32.mrb[0].mxu0
    %v150 = vadd.f32 %v65, %v149
    %v151 = vpop.f32.mrb[0].mxu0
    %v152 = vpop.f32.mrb[0].mxu0
    %v153 = vpop.f32.mrb[0].mxu0
    %154 = vdwg.mxu0
    %v155 = vmax.f32 %v150, 0.0
    %v156 = vpack.c.bf16 %v155, %v155
    %s157 = scalar_lea.vmem [#allocation5], 64
    %v158 = vld [vmem:[%s157] sm:$0xf]
    %v159 = vld [vmem:[%s157 + $0x4] sm:$0xf]
    %v160 = vld [vmem:[%s157 + $0x8] sm:$0xf]
    %v161 = vld [vmem:[%s157 + $0xc] sm:$0xf]
    %v162 = vld [vmem:[%s157 + $0x10] sm:$0xf]
    %v163 = vld [vmem:[%s157 + $0x14] sm:$0xf]
    %v164 = vld [vmem:[%s157 + $0x18] sm:$0xf]
    %v165 = vld [vmem:[%s157 + $0x1c] sm:$0xf]
    %v166 = vld [vmem:[%s157 + $0x20] sm:$0xf]
    %v167 = vld [vmem:[%s157 + $0x24] sm:$0xf]
    %v168 = vld [vmem:[%s157 + $0x28] sm:$0xf]
    %v169 = vld [vmem:[%s157 + $0x2c] sm:$0xf]
    %v170 = vld [vmem:[%s157 + $0x30] sm:$0xf]
    %v171 = vld [vmem:[%s157 + $0x34] sm:$0xf]
    %v172 = vld [vmem:[%s157 + $0x38] sm:$0xf]
    %v173 = vld [vmem:[%s157 + $0x3c] sm:$0xf]
    %s174 = scalar_lea.vmem %s2, 1
    %v175 = vld [vmem:[%s174] sm:$0x1]
    %v177 = vlaneseq
    %v178 = vshrl.u32 %v177, 7
    %v179 = vsub.s32 0, %v178
    %v180 = vrot.slane %v175, %v179
    %v198 = vunpack.c.l.b16 %v158
    %v199 = vunpack.c.l.b16 %v159
    %v200 = vunpack.c.l.b16 %v160
    %v201 = vunpack.c.l.b16 %v161
    %v202 = vunpack.c.l.b16 %v162
    %v203 = vunpack.c.l.b16 %v163
    %v204 = vunpack.c.l.b16 %v164
    %v205 = vunpack.c.l.b16 %v165
    %v206 = vunpack.c.l.b16 %v166
    %v207 = vunpack.c.l.b16 %v167
    %v208 = vunpack.c.l.b16 %v168
    %v209 = vunpack.c.l.b16 %v169
    %v210 = vunpack.c.l.b16 %v170
    %v211 = vunpack.c.l.b16 %v171
    %v212 = vunpack.c.l.b16 %v172
    %v213 = vunpack.c.l.b16 %v173
    %v214 = vpack.c.b16 %v199, %v198
    %v215 = vpack.c.b16 %v201, %v200
    %v216 = vpack.c.b16 %v203, %v202
    %v217 = vpack.c.b16 %v205, %v204
    %v218 = vpack.c.b16 %v207, %v206
    %v219 = vpack.c.b16 %v209, %v208
    %v220 = vpack.c.b16 %v211, %v210
    %v221 = vpack.c.b16 %v213, %v212
    %230 = vmatprep.subr.bf16.mxu0 0
    %231 = vmatpush1.bf16.msra.mxu0 %v214
    %232 = vmatprep.subr.bf16.mxu0 0
    %233 = vmatpush1.bf16.msra.mxu0 %v215
    %234 = vmatprep.subr.bf16.mxu0 0
    %235 = vmatpush1.bf16.msra.mxu0 %v216
    %236 = vmatprep.subr.bf16.mxu0 0
    %237 = vmatpush1.bf16.msra.mxu0 %v217
    %238 = vmatprep.subr.bf16.mxu0 0
    %239 = vmatpush1.bf16.msra.mxu0 %v218
    %240 = vmatprep.subr.bf16.mxu0 0
    %241 = vmatpush1.bf16.msra.mxu0 %v219
    %242 = vmatprep.subr.bf16.mxu0 0
    %243 = vmatpush1.bf16.msra.mxu0 %v220
    %244 = vmatprep.subr.bf16.mxu0 0
    %245 = vmatpush1.bf16.msra.mxu0 %v221
    %246 = vmatprep.subr.bf16.mxu0 0
    %247 = vmatpush1.bf16.msra.mxu0 0
    %248 = vmatprep.subr.bf16.mxu0 0
    %249 = vmatpush1.bf16.msra.mxu0 0
    %250 = vmatprep.subr.bf16.mxu0 0
    %251 = vmatpush1.bf16.msra.mxu0 0
    %252 = vmatprep.subr.bf16.mxu0 0
    %253 = vmatpush1.bf16.msra.mxu0 0
    %254 = vmatprep.subr.bf16.mxu0 0
    %255 = vmatpush1.bf16.msra.mxu0 0
    %256 = vmatprep.subr.bf16.mxu0 0
    %257 = vmatpush1.bf16.msra.mxu0 0
    %258 = vmatprep.subr.bf16.mxu0 0
    %259 = vmatpush1.bf16.msra.mxu0 0
    %260 = vmatprep.subr.bf16.mxu0 0
    %261 = vmatpush1.bf16.msra.mxu0 0
    %262 = vmatprep.mubr.bf16.mxu0 0
    %263 = vmatmul.mubr.bf16.gmra.mrb[0].mxu0 %v156
    %v264 = vpop.f32.mrb[0].mxu0
    %v265 = vadd.f32 %v180, %v264
    %v266 = vpop.f32.mrb[0].mxu0
    %v267 = vpop.f32.mrb[0].mxu0
    %v268 = vpop.f32.mrb[0].mxu0
    %269 = vdwg.mxu0
    %v270 = vmax.f32 %v265, 0.0
    %271 = vst [vmem:[#allocation7] sm:$0xff] %v270
    // Predicated region
    $region22: #{tpu_custom_call.1} parent=1 // pred_check
      _
    $region23: #{tpu_custom_call.1} parent=1 // pred_check_branch
      %273 = sbr.rel (0) target = $region25
    $region24: #{tpu_custom_call.1} parent=1 // pred_region
      %s275 = ssub.s32 128, 128
      %276 = vsyncadd [#allocation4], %s275
      %s278 = sshll.u32 [#allocation7], 4
      %s279 = int_to_ptr.vmem [resolvable:$true] %s278
      %281 = dma.vmem_to_hbm [thread:$0]  %s279, 128, %s3, [#allocation4]
    $region25: #{tpu_custom_call.1} parent=1 // pred_fallthru
      _
    // Predicated region
    $region26: #{tpu_custom_call.1} parent=1 // pred_check
      _
    $region27: #{tpu_custom_call.1} parent=1 // pred_check_branch
      %283 = sbr.rel (0) target = $region29
    $region28: #{tpu_custom_call.1} parent=1 // pred_region
      %284 = dma.done [#allocation4], 128
    $region29: #{tpu_custom_call.1} parent=1 // pred_fallthru
      _
    %285 = vsyncpa [#allocation3], 1
    %286 = vsyncpa [#allocation6], 1
    %287 = vsyncpa [#allocation4], 1

</llo_original>
